<compile_context>
chip_gen: v5e
topology: v5e:2x2
jax: 0.10.0
libtpu: 0.0.40
codegen_flags: <defaults>
</compile_context>

<pallas_src>
import math
import functools

import jax
import jax.numpy as jnp
from jax.experimental import pallas as pl
from jax.experimental.pallas import tpu as pltpu


def _round_up(n, m):
    return ((n + m - 1) // m) * m


def bayesian_linear_kernel(x_ref, mu_ref, std_ref, eps_ref, bias_ref, y_ref):
    # Reparameterized weight sample, stored pre-transposed (D, OUT_p) so that
    # the matmul output is lane-dense along OUT_p.  Pure VPU mul-add; the
    # exp(0.5*logvar) transcendental is hoisted to the wrapper.
    w = mu_ref[...] + std_ref[...] * eps_ref[...]              # (D, OUT_p)

    # y = x @ W^T + b on the MXU, accumulate in f32.
    y = jnp.dot(x_ref[...], w, preferred_element_type=jnp.float32)
    y_ref[...] = y + bias_ref[...]                             # (tb, OUT_p)


@functools.partial(jax.jit, static_argnames=("tb",))
def bayesian_linear_forward(x, weight_mu, weight_logvar, bias, eps, *, tb=128):
    """y = x @ (weight_mu + exp(0.5*weight_logvar) * eps).T + bias."""
    B, D = x.shape
    OUT = weight_mu.shape[0]

    # ---- grid-invariant layout plumbing (done once per forward in XLA) ----
    OUT_p = _round_up(OUT, 128)        # lane-dense output -> unmasked stores
    B_p = _round_up(B, tb)             # cdiv grid with zero-padded remainder

    mu_t = jnp.zeros((D, OUT_p), jnp.float32).at[:, :OUT].set(weight_mu.T)
    std_t = jnp.zeros((D, OUT_p), jnp.float32).at[:, :OUT].set(
        jnp.exp(0.5 * weight_logvar).T)                        # hoisted EUP work
    eps_t = jnp.zeros((D, OUT_p), jnp.float32).at[:, :OUT].set(eps.T)
    bias_p = jnp.zeros((1, OUT_p), jnp.float32).at[:, :OUT].set(
        bias.reshape(1, OUT))
    x_p = jnp.zeros((B_p, D), jnp.float32).at[:B].set(x)

    grid = (B_p // tb,)
    w_spec = pl.BlockSpec((D, OUT_p), lambda i: (0, 0))        # resident params

    y_p = pl.pallas_call(
        bayesian_linear_kernel,
        out_shape=jax.ShapeDtypeStruct((B_p, OUT_p), jnp.float32),
        grid_spec=pltpu.PrefetchScalarGridSpec(
            num_scalar_prefetch=0,
            grid=grid,
            in_specs=[
                pl.BlockSpec((tb, D), lambda i: (i, 0)),       # x batch tile
                w_spec,                                         # mu^T
                w_spec,                                         # exp(0.5*logvar)^T
                w_spec,                                         # eps^T
                pl.BlockSpec((1, OUT_p), lambda i: (0, 0)),     # bias
            ],
            out_specs=pl.BlockSpec((tb, OUT_p), lambda i: (i, 0)),
        ),
        compiler_params=pltpu.CompilerParams(
            dimension_semantics=("parallel",)),
    )(x_p, mu_t, std_t, eps_t, bias_p)

    return y_p[:B, :OUT]


if __name__ == "__main__":
    IN_FEATURES = 32
    OUT_FEATURES = 64
    B = 40   # intentionally not a multiple of the batch tile -> exercises padding

    key = jax.random.PRNGKey(0)
    k_x, k_mu, k_lv, k_eps = jax.random.split(key, 4)

    # Parameter init matching BayesianLinear.__init__ distributions.
    posterior_std_init = 0.001
    init_std = math.sqrt(2.0) / math.sqrt(IN_FEATURES)
    weight_mu = init_std * jax.random.normal(
        k_mu, (OUT_FEATURES, IN_FEATURES), jnp.float32)
    weight_logvar = (2.0 * math.log(posterior_std_init)
                     + 0.01 * jax.random.normal(
                         k_lv, (OUT_FEATURES, IN_FEATURES), jnp.float32))
    bias = jnp.zeros((OUT_FEATURES,), jnp.float32)

    x = jax.random.normal(k_x, (B, IN_FEATURES), jnp.float32)
    # torch.randn_like(weight_mu) equivalent: one weight-shaped N(0,1) draw per forward.
    eps = jax.random.normal(k_eps, (OUT_FEATURES, IN_FEATURES), jnp.float32)

    y = bayesian_linear_forward(x, weight_mu, weight_logvar, bias, eps)
    jax.block_until_ready(y)

    # Plain-JAX reference of the module forward.
    w_sample = weight_mu + jnp.exp(0.5 * weight_logvar) * eps
    y_ref = x @ w_sample.T + bias
    assert y.shape == y_ref.shape
    assert jnp.allclose(y, y_ref, atol=1e-4, rtol=1e-4), (
        float(jnp.max(jnp.abs(y - y_ref))))

    # TODO(synk): BayesianModule.kl_div() is not part of forward(); not implemented here.
    print("KERNEL_OK")
</pallas_src>

<mosaic_0001>
module attributes {stable_mosaic.version = 11 : i64} {
  func.func @bayesian_linear_kernel(%arg0: i32, %arg1: memref<128x32xf32, #tpu.memory_space<vmem>>, %arg2: memref<32x128xf32, #tpu.memory_space<vmem>>, %arg3: memref<32x128xf32, #tpu.memory_space<vmem>>, %arg4: memref<32x128xf32, #tpu.memory_space<vmem>>, %arg5: memref<1x128xf32, #tpu.memory_space<vmem>>, %arg6: memref<128x128xf32, #tpu.memory_space<vmem>>) attributes {dimension_semantics = [#tpu.dimension_semantics<parallel>], iteration_bounds = array<i64: 1>, scalar_prefetch = 0 : i64, scratch_operands = 0 : i64, tpu.core_type = #tpu.core_type<tc>, window_params = [{transform_indices = @transform_0, window_bounds = array<i64: 128, 32>}, {pipeline_mode = #tpu.pipeline_mode<synchronous>, transform_indices = @transform_1, window_bounds = array<i64: 32, 128>}, {pipeline_mode = #tpu.pipeline_mode<synchronous>, transform_indices = @transform_2, window_bounds = array<i64: 32, 128>}, {pipeline_mode = #tpu.pipeline_mode<synchronous>, transform_indices = @transform_3, window_bounds = array<i64: 32, 128>}, {pipeline_mode = #tpu.pipeline_mode<synchronous>, transform_indices = @transform_4, window_bounds = array<i64: 1, 128>}, {transform_indices = @transform_5, window_bounds = array<i64: 128, 128>}]} {
    %c0 = arith.constant 0 : index
    %c0_0 = arith.constant 0 : index
    %0 = vector.load %arg2[%c0, %c0_0] : memref<32x128xf32, #tpu.memory_space<vmem>>, vector<32x128xf32>
    %c0_1 = arith.constant 0 : index
    %c0_2 = arith.constant 0 : index
    %1 = vector.load %arg3[%c0_1, %c0_2] : memref<32x128xf32, #tpu.memory_space<vmem>>, vector<32x128xf32>
    %c0_3 = arith.constant 0 : index
    %c0_4 = arith.constant 0 : index
    %2 = vector.load %arg4[%c0_3, %c0_4] : memref<32x128xf32, #tpu.memory_space<vmem>>, vector<32x128xf32>
    %3 = arith.mulf %1, %2 : vector<32x128xf32>
    %4 = arith.addf %0, %3 : vector<32x128xf32>
    %c0_5 = arith.constant 0 : index
    %c0_6 = arith.constant 0 : index
    %5 = vector.load %arg1[%c0_5, %c0_6] : memref<128x32xf32, #tpu.memory_space<vmem>>, vector<128x32xf32>
    %cst = arith.constant dense<0.000000e+00> : vector<128x128xf32>
    %6 = tpu.matmul %5, %4, %cst {dimension_numbers = #tpu.dot_dimension_numbers<[1], [0], [0], [1], [0, 0, 1, 1], [], []>} : vector<128x32xf32>, vector<32x128xf32>, vector<128x128xf32> -> vector<128x128xf32>
    %c0_7 = arith.constant 0 : index
    %c0_8 = arith.constant 0 : index
    %7 = vector.load %arg5[%c0_7, %c0_8] : memref<1x128xf32, #tpu.memory_space<vmem>>, vector<1x128xf32>
    %8 = vector.broadcast %7 : vector<1x128xf32> to vector<128x128xf32>
    %9 = arith.addf %6, %8 : vector<128x128xf32>
    %c0_9 = arith.constant 0 : index
    %c0_10 = arith.constant 0 : index
    %10 = vector.load %arg6[%c0_9, %c0_10] : memref<128x128xf32, #tpu.memory_space<vmem>>, vector<128x128xf32>
    tpu.vector_store %arg6[%c0_9, %c0_10], %9 {strides = array<i32>} : memref<128x128xf32, #tpu.memory_space<vmem>>, vector<128x128xf32>,
    return
  }
  func.func @transform_0(%arg0: i32) -> (i32, i32) {
    %c0_i32 = arith.constant 0 : i32
    %c0_i32_0 = arith.constant 0 : i32
    return %arg0, %c0_i32 : i32, i32
  }
  func.func @transform_1(%arg0: i32) -> (i32, i32) {
    %c0_i32 = arith.constant 0 : i32
    %c0_i32_0 = arith.constant 0 : i32
    %c0_i32_1 = arith.constant 0 : i32
    return %c0_i32, %c0_i32_0 : i32, i32
  }
  func.func @transform_2(%arg0: i32) -> (i32, i32) {
    %c0_i32 = arith.constant 0 : i32
    %c0_i32_0 = arith.constant 0 : i32
    %c0_i32_1 = arith.constant 0 : i32
    return %c0_i32, %c0_i32_0 : i32, i32
  }
  func.func @transform_3(%arg0: i32) -> (i32, i32) {
    %c0_i32 = arith.constant 0 : i32
    %c0_i32_0 = arith.constant 0 : i32
    %c0_i32_1 = arith.constant 0 : i32
    return %c0_i32, %c0_i32_0 : i32, i32
  }
  func.func @transform_4(%arg0: i32) -> (i32, i32) {
    %c0_i32 = arith.constant 0 : i32
    %c0_i32_0 = arith.constant 0 : i32
    %c0_i32_1 = arith.constant 0 : i32
    return %c0_i32, %c0_i32_0 : i32, i32
  }
  func.func @transform_5(%arg0: i32) -> (i32, i32) {
    %c0_i32 = arith.constant 0 : i32
    %c0_i32_0 = arith.constant 0 : i32
    return %arg0, %c0_i32 : i32, i32
  }
}

</mosaic_0001>

<llo_original>
// kernel: bayesian_linear_forward.1
$region0: #{bayesian_linear_forward.1}
  #allocation0 [shape = 'u32[]', space=smem, size = 0x4, offset = 0x4, fixed_abs, tag = 'smem constant byte address 0x4 - core index']
  #allocation1 [shape = 'u32[72,128]{1,0:T(1,128)}', space=vmem, size = 0x9000, scoped, tag = 'internal scratch']
  %s0 = inlined_call_operand.vmem [shape: f32[128,32], index: 0, kind: input, shape index: {}]
  %s1 = inlined_call_operand.vmem [shape: f32[32,128], index: 1, kind: input, shape index: {}]
  %s2 = inlined_call_operand.vmem [shape: f32[32,128], index: 2, kind: input, shape index: {}]
  %s3 = inlined_call_operand.vmem [shape: f32[32,128], index: 3, kind: input, shape index: {}]
  %s4 = inlined_call_operand.vmem [shape: f32[1,128], index: 4, kind: input, shape index: {}]
  %s5 = inlined_call_operand.vmem [shape: f32[128,128], index: 5, kind: output, shape index: {}]
  %s6 = sld [smem:[#allocation0]]
  $region30: #{bayesian_linear_forward.1} parent=0
    _
  %s8 = ssub.s32 1, %s6
  %s9 = scalar_select 0, %s8, %s6
  // Predicated region
  $region2: #{bayesian_linear_forward.1} parent=0 // pred_check
    _
  $region3: #{bayesian_linear_forward.1} parent=0 // pred_check_branch
    %11 = sbr.rel (0) target = $region5
  $region4: #{bayesian_linear_forward.1} parent=0 // pred_region
    _
  $region5: #{bayesian_linear_forward.1} parent=0 // pred_fallthru
    _
  // Predicated region
  $region6: #{bayesian_linear_forward.1} parent=0 // pred_check
    _
  $region7: #{bayesian_linear_forward.1} parent=0 // pred_check_branch
    %13 = sbr.rel (0) target = $region9
  $region8: #{bayesian_linear_forward.1} parent=0 // pred_region
    _
  $region9: #{bayesian_linear_forward.1} parent=0 // pred_fallthru
    _
  // Predicated region
  $region10: #{bayesian_linear_forward.1} parent=0 // pred_check
    _
  $region11: #{bayesian_linear_forward.1} parent=0 // pred_check_branch
    %15 = sbr.rel (0) target = $region13
  $region12: #{bayesian_linear_forward.1} parent=0 // pred_region
    _
  $region13: #{bayesian_linear_forward.1} parent=0 // pred_fallthru
    _
  // Predicated region
  $region14: #{bayesian_linear_forward.1} parent=0 // pred_check
    _
  $region15: #{bayesian_linear_forward.1} parent=0 // pred_check_branch
    %17 = sbr.rel (0) target = $region17
  $region16: #{bayesian_linear_forward.1} parent=0 // pred_region
    _
  $region17: #{bayesian_linear_forward.1} parent=0 // pred_fallthru
    _
  // Predicated region
  $region18: #{bayesian_linear_forward.1} parent=0 // pred_check
    _
  $region19: #{bayesian_linear_forward.1} parent=0 // pred_check_branch
    %19 = sbr.rel (0) target = $region21
  $region20: #{bayesian_linear_forward.1} parent=0 // pred_region
    _
  $region21: #{bayesian_linear_forward.1} parent=0 // pred_fallthru
    _
  %v20 = vld [vmem:[%s1] sm:$0xff]
  %v21 = vld [vmem:[%s1 + $0x8] sm:$0xff]
  %v22 = vld [vmem:[%s1 + $0x10] sm:$0xff]
  %v23 = vld [vmem:[%s1 + $0x18] sm:$0xff]
  %v24 = vld [vmem:[%s2] sm:$0xff]
  %v25 = vld [vmem:[%s2 + $0x8] sm:$0xff]
  %v26 = vld [vmem:[%s2 + $0x10] sm:$0xff]
  %v27 = vld [vmem:[%s2 + $0x18] sm:$0xff]
  %v28 = vld [vmem:[%s3] sm:$0xff]
  %v29 = vld [vmem:[%s3 + $0x8] sm:$0xff]
  %v30 = vld [vmem:[%s3 + $0x10] sm:$0xff]
  %v31 = vld [vmem:[%s3 + $0x18] sm:$0xff]
  %v32 = vmul.f32 %v24, %v28
  %v33 = vmul.f32 %v25, %v29
  %v34 = vmul.f32 %v26, %v30
  %v35 = vmul.f32 %v27, %v31
  %v36 = vadd.f32 %v20, %v32
  %v37 = vadd.f32 %v21, %v33
  %v38 = vadd.f32 %v22, %v34
  %v39 = vadd.f32 %v23, %v35
  %v40 = vld [vmem:[%s0] sm:$0xff]
  %v41 = vld [vmem:[%s0 + $0x8] sm:$0xff]
  %v42 = vld [vmem:[%s0 + $0x10] sm:$0xff]
  %v43 = vld [vmem:[%s0 + $0x18] sm:$0xff]
  %v44 = vld [vmem:[%s0 + $0x20] sm:$0xff]
  %v45 = vld [vmem:[%s0 + $0x28] sm:$0xff]
  %v46 = vld [vmem:[%s0 + $0x30] sm:$0xff]
  %v47 = vld [vmem:[%s0 + $0x38] sm:$0xff]
  %v48 = vld [vmem:[%s0 + $0x40] sm:$0xff]
  %v49 = vld [vmem:[%s0 + $0x48] sm:$0xff]
  %v50 = vld [vmem:[%s0 + $0x50] sm:$0xff]
  %v51 = vld [vmem:[%s0 + $0x58] sm:$0xff]
  %v52 = vld [vmem:[%s0 + $0x60] sm:$0xff]
  %v53 = vld [vmem:[%s0 + $0x68] sm:$0xff]
  %v54 = vld [vmem:[%s0 + $0x70] sm:$0xff]
  %v55 = vld [vmem:[%s0 + $0x78] sm:$0xff]
  %v56 = vld [vmem:[%s4] sm:$0x1]
  %v58 = vperm.slane %v56, 0
  %vm60 = vcmask 261120
  %v62 = vsel %vm60, %v40, 0
  %v65 = vsel %vm60, %v41, 0
  %v68 = vsel %vm60, %v42, 0
  %v71 = vsel %vm60, %v43, 0
  %v74 = vsel %vm60, %v44, 0
  %v77 = vsel %vm60, %v45, 0
  %v80 = vsel %vm60, %v46, 0
  %v83 = vsel %vm60, %v47, 0
  %v86 = vsel %vm60, %v48, 0
  %v89 = vsel %vm60, %v49, 0
  %v92 = vsel %vm60, %v50, 0
  %v95 = vsel %vm60, %v51, 0
  %v98 = vsel %vm60, %v52, 0
  %v101 = vsel %vm60, %v53, 0
  %v104 = vsel %vm60, %v54, 0
  %v107 = vsel %vm60, %v55, 0
  %109 = vmatpush.msra.mxu0 0.0
  %110 = vmatpush.msra.mxu0 0.0
  %111 = vmatpush.msra.mxu0 0.0
  %112 = vmatpush.msra.mxu0 0.0
  %113 = vmatpush.msra.mxu0 0.0
  %114 = vmatpush.msra.mxu0 0.0
  %115 = vmatpush.msra.mxu0 0.0
  %116 = vmatpush.msra.mxu0 0.0
  %117 = vmatpush.msra.mxu0 0.0
  %118 = vmatpush.msra.mxu0 0.0
  %119 = vmatpush.msra.mxu0 0.0
  %120 = vmatpush.msra.mxu0 0.0
  %121 = vmatpush.msra.mxu0 %v39
  %122 = vmatpush.msra.mxu0 %v38
  %123 = vmatpush.msra.mxu0 %v37
  %124 = vmatpush.msra.mxu0 %v36
  %125 = vmatmul.f32.gmra.mxu0 %v62
  %v126 = vpop.f32.mrf.mxu0
  %v127 = vadd.f32 %v58, %v126
  %128 = vmatmul.f32.gmra.mxu0 %v65
  %v129 = vpop.f32.mrf.mxu0
  %v130 = vadd.f32 %v58, %v129
  %131 = vmatmul.f32.gmra.mxu0 %v68
  %v132 = vpop.f32.mrf.mxu0
  %v133 = vadd.f32 %v58, %v132
  %134 = vmatmul.f32.gmra.mxu0 %v71
  %v135 = vpop.f32.mrf.mxu0
  %v136 = vadd.f32 %v58, %v135
  %137 = vmatmul.f32.gmra.mxu0 %v74
  %v138 = vpop.f32.mrf.mxu0
  %v139 = vadd.f32 %v58, %v138
  %140 = vmatmul.f32.gmra.mxu0 %v77
  %v141 = vpop.f32.mrf.mxu0
  %v142 = vadd.f32 %v58, %v141
  %143 = vmatmul.f32.gmra.mxu0 %v80
  %v144 = vpop.f32.mrf.mxu0
  %v145 = vadd.f32 %v58, %v144
  %146 = vmatmul.f32.gmra.mxu0 %v83
  %v147 = vpop.f32.mrf.mxu0
  %v148 = vadd.f32 %v58, %v147
  %149 = vmatmul.f32.gmra.mxu0 %v86
  %v150 = vpop.f32.mrf.mxu0
  %v151 = vadd.f32 %v58, %v150
  %152 = vmatmul.f32.gmra.mxu0 %v89
  %v153 = vpop.f32.mrf.mxu0
  %v154 = vadd.f32 %v58, %v153
  %155 = vmatmul.f32.gmra.mxu0 %v92
  %v156 = vpop.f32.mrf.mxu0
  %v157 = vadd.f32 %v58, %v156
  %158 = vmatmul.f32.gmra.mxu0 %v95
  %v159 = vpop.f32.mrf.mxu0
  %v160 = vadd.f32 %v58, %v159
  %161 = vmatmul.f32.gmra.mxu0 %v98
  %v162 = vpop.f32.mrf.mxu0
  %v163 = vadd.f32 %v58, %v162
  %164 = vmatmul.f32.gmra.mxu0 %v101
  %v165 = vpop.f32.mrf.mxu0
  %v166 = vadd.f32 %v58, %v165
  %167 = vmatmul.f32.gmra.mxu0 %v104
  %v168 = vpop.f32.mrf.mxu0
  %v169 = vadd.f32 %v58, %v168
  %170 = vmatmul.f32.gmra.mxu0 %v107
  %v171 = vpop.f32.mrf.mxu0
  %v172 = vadd.f32 %v58, %v171
  %173 = vdwg.mxu0
  %174 = vst [vmem:[%s5] sm:$0xff] %v127
  %175 = vst [vmem:[%s5 + $0x8] sm:$0xff] %v130
  %176 = vst [vmem:[%s5 + $0x10] sm:$0xff] %v133
  %177 = vst [vmem:[%s5 + $0x18] sm:$0xff] %v136
  %178 = vst [vmem:[%s5 + $0x20] sm:$0xff] %v139
  %179 = vst [vmem:[%s5 + $0x28] sm:$0xff] %v142
  %180 = vst [vmem:[%s5 + $0x30] sm:$0xff] %v145
  %181 = vst [vmem:[%s5 + $0x38] sm:$0xff] %v148
  %182 = vst [vmem:[%s5 + $0x40] sm:$0xff] %v151
  %183 = vst [vmem:[%s5 + $0x48] sm:$0xff] %v154
  %184 = vst [vmem:[%s5 + $0x50] sm:$0xff] %v157
  %185 = vst [vmem:[%s5 + $0x58] sm:$0xff] %v160
  %186 = vst [vmem:[%s5 + $0x60] sm:$0xff] %v163
  %187 = vst [vmem:[%s5 + $0x68] sm:$0xff] %v166
  %188 = vst [vmem:[%s5 + $0x70] sm:$0xff] %v169
  %189 = vst [vmem:[%s5 + $0x78] sm:$0xff] %v172
  // Predicated region
  $region22: #{bayesian_linear_forward.1} parent=0 // pred_check
    _
  $region23: #{bayesian_linear_forward.1} parent=0 // pred_check_branch
    %191 = sbr.rel (0) target = $region25
  $region24: #{bayesian_linear_forward.1} parent=0 // pred_region
    _
  $region25: #{bayesian_linear_forward.1} parent=0 // pred_fallthru
    _
  // Predicated region
  $region26: #{bayesian_linear_forward.1} parent=0 // pred_check
    _
  $region27: #{bayesian_linear_forward.1} parent=0 // pred_check_branch
    %193 = sbr.rel (0) target = $region29
  $region28: #{bayesian_linear_forward.1} parent=0 // pred_region
    _
  $region29: #{bayesian_linear_forward.1} parent=0 // pred_fallthru
    _

</llo_original>
